<compile_context>
chip_gen: v5e
topology: v5e:2x2
jax: 0.10.0
libtpu: 0.0.40
codegen_flags: <defaults>
</compile_context>

<pallas_src>
import jax
import jax.numpy as jnp
from jax.experimental import pallas as pl
from jax.experimental.pallas import tpu as pltpu


# ----------------------------- Pallas kernel ------------------------------ #
def _se_kernel(se_ref, x_ref, w1_ref, b1_ref, w2_ref, b2_ref, o_ref):
    # se_ref / x_ref / o_ref: (C, TP) channel-major tiles, pixels on lanes.
    se = se_ref[...]
    h1 = jnp.dot(w1_ref[...], se, preferred_element_type=jnp.float32) + b1_ref[...]
    h1 = jnp.maximum(h1, 0.0)                        # act1 = ReLU
    h2 = jnp.dot(w2_ref[...], h1, preferred_element_type=jnp.float32) + b2_ref[...]
    o_ref[...] = x_ref[...] * jax.nn.sigmoid(h2)     # x * gate


# ------------------------------- wrapper ----------------------------------- #
def se_layer(x, x_se, w1, b1, w2, b2, *, tile_pixels=2048):
    """Pallas implementation of SELayer.forward.

    x, x_se : (N, C, H, W) float32 (NCHW, PyTorch convention)
    w1 : (C, C)  == conv_reduce.weight[:, :, 0, 0]   (out, in) -- NOT transposed
    b1 : (C,)    == conv_reduce.bias
    w2 : (C, C)  == conv_expand.weight[:, :, 0, 0]   (out, in)
    b2 : (C,)    == conv_expand.bias
    """
    N, C, H, W = x.shape
    HW = H * W

    x_f = x.reshape(N, C, HW)        # free reshapes (no HBM copy)
    se_f = x_se.reshape(N, C, HW)

    # Lane-dense pixel tile: multiple of 128, no larger than needed.
    tile_pixels = max(128, (tile_pixels // 128) * 128)
    tp = min(tile_pixels, pl.cdiv(HW, 128) * 128)
    hw_pad = pl.cdiv(HW, tp) * tp
    if hw_pad != HW:
        pad = ((0, 0), (0, 0), (0, hw_pad - HW))
        x_f = jnp.pad(x_f, pad)
        se_f = jnp.pad(se_f, pad)

    grid = (N, hw_pad // tp)

    out = pl.pallas_call(
        _se_kernel,
        out_shape=jax.ShapeDtypeStruct((N, C, hw_pad), jnp.float32),
        grid=grid,
        in_specs=[
            pl.BlockSpec((None, C, tp), lambda n, p: (n, 0, p)),   # x_se tile
            pl.BlockSpec((None, C, tp), lambda n, p: (n, 0, p)),   # x tile
            pl.BlockSpec((C, C), lambda n, p: (0, 0)),             # w1 (resident)
            pl.BlockSpec((C, 1), lambda n, p: (0, 0)),             # b1 (resident)
            pl.BlockSpec((C, C), lambda n, p: (0, 0)),             # w2 (resident)
            pl.BlockSpec((C, 1), lambda n, p: (0, 0)),             # b2 (resident)
        ],
        out_specs=pl.BlockSpec((None, C, tp), lambda n, p: (n, 0, p)),
        compiler_params=pltpu.CompilerParams(
            dimension_semantics=("parallel", "parallel")),
    )(se_f, x_f, w1, b1.reshape(C, 1), w2, b2.reshape(C, 1))

    return out[:, :, :HW].reshape(N, C, H, W)


# --------------------------- pure-JAX reference ---------------------------- #
def _reference_forward(x, x_se, w1, b1, w2, b2):
    h1 = jnp.einsum("oc,nchw->nohw", w1, x_se) + b1[None, :, None, None]
    h1 = jnp.maximum(h1, 0.0)
    h2 = jnp.einsum("oc,nchw->nohw", w2, h1) + b2[None, :, None, None]
    return x * jax.nn.sigmoid(h2)


# --------------------------------- main ------------------------------------ #
if __name__ == "__main__":
    key = jax.random.PRNGKey(0)

    # Test 1: H*W already 128-aligned (no padding path).
    N, C, H, W = 2, 4, 16, 16
    k = jax.random.split(key, 6)
    x = jax.random.normal(k[0], (N, C, H, W), jnp.float32)
    x_se = jax.random.normal(k[1], (N, C, H, W), jnp.float32)
    w1 = jax.random.normal(k[2], (C, C), jnp.float32) * 0.1
    b1 = jax.random.normal(k[3], (C,), jnp.float32) * 0.1
    w2 = jax.random.normal(k[4], (C, C), jnp.float32) * 0.1
    b2 = jax.random.normal(k[5], (C,), jnp.float32) * 0.1

    out = jax.block_until_ready(se_layer(x, x_se, w1, b1, w2, b2))
    ref = _reference_forward(x, x_se, w1, b1, w2, b2)
    assert out.shape == (N, C, H, W)
    assert jnp.allclose(out, ref, atol=1e-5, rtol=1e-5), "mismatch vs reference (aligned)"

    # Test 2: odd spatial size exercises the padded last-tile path.
    N2, C2, H2, W2 = 1, 8, 5, 7
    k2 = jax.random.split(jax.random.PRNGKey(1), 6)
    x2 = jax.random.normal(k2[0], (N2, C2, H2, W2), jnp.float32)
    x_se2 = jax.random.normal(k2[1], (N2, C2, H2, W2), jnp.float32)
    w1_2 = jax.random.normal(k2[2], (C2, C2), jnp.float32) * 0.1
    b1_2 = jax.random.normal(k2[3], (C2,), jnp.float32) * 0.1
    w2_2 = jax.random.normal(k2[4], (C2, C2), jnp.float32) * 0.1
    b2_2 = jax.random.normal(k2[5], (C2,), jnp.float32) * 0.1

    out2 = jax.block_until_ready(se_layer(x2, x_se2, w1_2, b1_2, w2_2, b2_2))
    ref2 = _reference_forward(x2, x_se2, w1_2, b1_2, w2_2, b2_2)
    assert out2.shape == (N2, C2, H2, W2)
    assert jnp.allclose(out2, ref2, atol=1e-5, rtol=1e-5), "mismatch vs reference (padded)"

    print("KERNEL_OK")
</pallas_src>

<mosaic_0001>
module attributes {stable_mosaic.version = 11 : i64} {
  func.func @_se_kernel(%arg0: i32, %arg1: i32, %arg2: memref<1x4x256xf32, #tpu.memory_space<vmem>>, %arg3: memref<1x4x256xf32, #tpu.memory_space<vmem>>, %arg4: memref<4x4xf32, #tpu.memory_space<vmem>>, %arg5: memref<4x1xf32, #tpu.memory_space<vmem>>, %arg6: memref<4x4xf32, #tpu.memory_space<vmem>>, %arg7: memref<4x1xf32, #tpu.memory_space<vmem>>, %arg8: memref<1x4x256xf32, #tpu.memory_space<vmem>>) attributes {dimension_semantics = [#tpu.dimension_semantics<parallel>, #tpu.dimension_semantics<parallel>], iteration_bounds = array<i64: 2, 1>, scalar_prefetch = 0 : i64, scratch_operands = 0 : i64, tpu.core_type = #tpu.core_type<tc>, window_params = [{transform_indices = @transform_0, window_bounds = array<i64: 1, 4, 256>}, {transform_indices = @transform_1, window_bounds = array<i64: 1, 4, 256>}, {pipeline_mode = #tpu.pipeline_mode<synchronous>, transform_indices = @transform_2, window_bounds = array<i64: 4, 4>}, {pipeline_mode = #tpu.pipeline_mode<synchronous>, transform_indices = @transform_3, window_bounds = array<i64: 4, 1>}, {pipeline_mode = #tpu.pipeline_mode<synchronous>, transform_indices = @transform_4, window_bounds = array<i64: 4, 4>}, {pipeline_mode = #tpu.pipeline_mode<synchronous>, transform_indices = @transform_5, window_bounds = array<i64: 4, 1>}, {transform_indices = @transform_6, window_bounds = array<i64: 1, 4, 256>}]} {
    %c0 = arith.constant 0 : index
    %c0_0 = arith.constant 0 : index
    %c0_1 = arith.constant 0 : index
    %0 = vector.load %arg2[%c0, %c0_0, %c0_1] : memref<1x4x256xf32, #tpu.memory_space<vmem>>, vector<1x4x256xf32>
    %1 = vector.shape_cast %0 : vector<1x4x256xf32> to vector<4x256xf32>
    %c0_2 = arith.constant 0 : index
    %c0_3 = arith.constant 0 : index
    %2 = vector.load %arg4[%c0_2, %c0_3] : memref<4x4xf32, #tpu.memory_space<vmem>>, vector<4x4xf32>
    %cst = arith.constant dense<0.000000e+00> : vector<4x256xf32>
    %3 = tpu.matmul %2, %1, %cst {dimension_numbers = #tpu.dot_dimension_numbers<[1], [0], [0], [1], [0, 0, 1, 1], [], []>} : vector<4x4xf32>, vector<4x256xf32>, vector<4x256xf32> -> vector<4x256xf32>
    %c0_4 = arith.constant 0 : index
    %c0_5 = arith.constant 0 : index
    %4 = vector.load %arg5[%c0_4, %c0_5] : memref<4x1xf32, #tpu.memory_space<vmem>>, vector<4x1xf32>
    %5 = vector.broadcast %4 : vector<4x1xf32> to vector<4x256xf32>
    %6 = arith.addf %3, %5 : vector<4x256xf32>
    %cst_6 = arith.constant 0.000000e+00 : f32
    %7 = vector.broadcast %cst_6 : f32 to vector<4x256xf32>
    %8 = arith.maximumf %6, %7 : vector<4x256xf32>
    %c0_7 = arith.constant 0 : index
    %c0_8 = arith.constant 0 : index
    %9 = vector.load %arg6[%c0_7, %c0_8] : memref<4x4xf32, #tpu.memory_space<vmem>>, vector<4x4xf32>
    %cst_9 = arith.constant dense<0.000000e+00> : vector<4x256xf32>
    %10 = tpu.matmul %9, %8, %cst_9 {dimension_numbers = #tpu.dot_dimension_numbers<[1], [0], [0], [1], [0, 0, 1, 1], [], []>} : vector<4x4xf32>, vector<4x256xf32>, vector<4x256xf32> -> vector<4x256xf32>
    %c0_10 = arith.constant 0 : index
    %c0_11 = arith.constant 0 : index
    %11 = vector.load %arg7[%c0_10, %c0_11] : memref<4x1xf32, #tpu.memory_space<vmem>>, vector<4x1xf32>
    %12 = vector.broadcast %11 : vector<4x1xf32> to vector<4x256xf32>
    %13 = arith.addf %10, %12 : vector<4x256xf32>
    %c0_12 = arith.constant 0 : index
    %c0_13 = arith.constant 0 : index
    %c0_14 = arith.constant 0 : index
    %14 = vector.load %arg3[%c0_12, %c0_13, %c0_14] : memref<1x4x256xf32, #tpu.memory_space<vmem>>, vector<1x4x256xf32>
    %15 = vector.shape_cast %14 : vector<1x4x256xf32> to vector<4x256xf32>
    %16 = arith.negf %13 : vector<4x256xf32>
    %17 = math.exp %16 : vector<4x256xf32>
    %cst_15 = arith.constant 1.000000e+00 : f32
    %18 = vector.broadcast %cst_15 : f32 to vector<4x256xf32>
    %19 = arith.addf %18, %17 : vector<4x256xf32>
    %20 = arith.divf %18, %19 : vector<4x256xf32>
    %21 = arith.mulf %15, %20 : vector<4x256xf32>
    %c0_16 = arith.constant 0 : index
    %c0_17 = arith.constant 0 : index
    %c0_18 = arith.constant 0 : index
    %22 = vector.load %arg8[%c0_16, %c0_17, %c0_18] : memref<1x4x256xf32, #tpu.memory_space<vmem>>, vector<1x4x256xf32>
    %23 = vector.shape_cast %22 : vector<1x4x256xf32> to vector<4x256xf32>
    %24 = vector.shape_cast %21 : vector<4x256xf32> to vector<1x4x256xf32>
    tpu.vector_store %arg8[%c0_16, %c0_17, %c0_18], %24 {strides = array<i32>} : memref<1x4x256xf32, #tpu.memory_space<vmem>>, vector<1x4x256xf32>,
    return
  }
  func.func @transform_0(%arg0: i32, %arg1: i32) -> (i32, i32, i32) {
    %c0_i32 = arith.constant 0 : i32
    %c0_i32_0 = arith.constant 0 : i32
    return %arg0, %c0_i32, %arg1 : i32, i32, i32
  }
  func.func @transform_1(%arg0: i32, %arg1: i32) -> (i32, i32, i32) {
    %c0_i32 = arith.constant 0 : i32
    %c0_i32_0 = arith.constant 0 : i32
    return %arg0, %c0_i32, %arg1 : i32, i32, i32
  }
  func.func @transform_2(%arg0: i32, %arg1: i32) -> (i32, i32) {
    %c0_i32 = arith.constant 0 : i32
    %c0_i32_0 = arith.constant 0 : i32
    %c0_i32_1 = arith.constant 0 : i32
    return %c0_i32, %c0_i32_0 : i32, i32
  }
  func.func @transform_3(%arg0: i32, %arg1: i32) -> (i32, i32) {
    %c0_i32 = arith.constant 0 : i32
    %c0_i32_0 = arith.constant 0 : i32
    %c0_i32_1 = arith.constant 0 : i32
    return %c0_i32, %c0_i32_0 : i32, i32
  }
  func.func @transform_4(%arg0: i32, %arg1: i32) -> (i32, i32) {
    %c0_i32 = arith.constant 0 : i32
    %c0_i32_0 = arith.constant 0 : i32
    %c0_i32_1 = arith.constant 0 : i32
    return %c0_i32, %c0_i32_0 : i32, i32
  }
  func.func @transform_5(%arg0: i32, %arg1: i32) -> (i32, i32) {
    %c0_i32 = arith.constant 0 : i32
    %c0_i32_0 = arith.constant 0 : i32
    %c0_i32_1 = arith.constant 0 : i32
    return %c0_i32, %c0_i32_0 : i32, i32
  }
  func.func @transform_6(%arg0: i32, %arg1: i32) -> (i32, i32, i32) {
    %c0_i32 = arith.constant 0 : i32
    %c0_i32_0 = arith.constant 0 : i32
    return %arg0, %c0_i32, %arg1 : i32, i32, i32
  }
}

</mosaic_0001>

<llo_original>
// kernel: tpu_custom_call.1
$region0: #{tpu_custom_call.1}
  #allocation0 [shape = 'u32[]', space=smem, size = 0x4, offset = 0x4, fixed_abs, tag = 'smem constant byte address 0x4 - core index']
  #allocation1 [shape = 'u32[72,128]{1,0:T(1,128)}', space=vmem, size = 0x9000, scoped, tag = 'internal scratch']
  %s0 = inlined_call_operand.hbm [shape: f32[2,4,256], index: 0, kind: input, shape index: {}]
  %s1 = inlined_call_operand.hbm [shape: f32[2,4,256], index: 1, kind: input, shape index: {}]
  %s2 = inlined_call_operand.vmem [shape: f32[4,4], index: 2, kind: input, shape index: {}]
  %s3 = inlined_call_operand.vmem [shape: f32[4,1], index: 3, kind: input, shape index: {}]
  %s4 = inlined_call_operand.vmem [shape: f32[4,4], index: 4, kind: input, shape index: {}]
  %s5 = inlined_call_operand.vmem [shape: f32[4,1], index: 5, kind: input, shape index: {}]
  %s6 = inlined_call_operand.hbm [shape: f32[2,4,256], index: 6, kind: output, shape index: {}]
  %s7 = sld [smem:[#allocation0]]
  $region65: #{tpu_custom_call.1} parent=0
    _
  %s9 = ssub.s32 1, %s7
  %s10 = scalar_select 0, %s9, %s7
  $region1: #{tpu_custom_call.1} parent=0
    #allocation2 [shape = 'u8[8192]{0}', space=vmem, size = 0x2000, scoped, tag = 'input window, operand 0']
    #allocation3 [shape = 's32[2]{0}', space=sflag, size = 0x8, scoped, tag = 'scoped memory for tpu_custom_call.1']
    #allocation4 [shape = 's32[2]{0}', space=sflag, size = 0x8, scoped, tag = 'scoped memory for tpu_custom_call.1']
    #allocation5 [shape = 'u8[8192]{0}', space=vmem, size = 0x2000, scoped, tag = 'input window, operand 1']
    #allocation6 [shape = 's32[2]{0}', space=sflag, size = 0x8, scoped, tag = 'scoped memory for tpu_custom_call.1']
    #allocation7 [shape = 'u8[8192]{0}', space=vmem, size = 0x2000, scoped, tag = 'output window, operand 0']
    %11 = vsyncpa [#allocation3], 0
    %s12 = scalar_lea.sflag [#allocation3], 1
    %13 = vsyncpa %s12, 0
    %14 = vsyncpa [#allocation6], 0
    %s15 = scalar_lea.sflag [#allocation6], 1
    %16 = vsyncpa %s15, 0
    %17 = vsyncpa [#allocation4], 0
    %s18 = scalar_lea.sflag [#allocation4], 1
    %19 = vsyncpa %s18, 0
    loop: start=0, step=1, limit=4
    $region2: #{tpu_custom_call.1} parent=1 // loop_pre_header
      _
    $region3: #{tpu_custom_call.1} parent=1 // loop_header
      %s21 = sphi 0, %s25
      %p22 = scmp.ge.s32.totalorder %s21, 4
      %s28 = sphi 0, %s40
      %s29 = sphi 0, %s36
      %s30 = sphi 0, %s28
      %s31 = sphi 0, %s29
      %s32 = sphi 0, %s30
      %s33 = sphi 0, %s31
      %s45 = sphi 0, %s47
      %s48 = sphi 0, %s45
      %s49 = sphi 0, %s48
      %s65 = sphi 0, %s49
      %s73 = sphi 0, %s75
      %s76 = sphi 0, %s73
      %s77 = sphi 0, %s76
      %s93 = sphi 0, %s77
      %s97 = sphi 0, %s97
      %s99 = sphi 0, %s97
      %s100 = sphi 0, %s99
      %s114 = sphi 0, %s100
      %s118 = sphi 0, %s118
      %s120 = sphi 0, %s118
      %s121 = sphi 0, %s120
      %s135 = sphi 0, %s121
      %s139 = sphi 0, %s139
      %s141 = sphi 0, %s139
      %s142 = sphi 0, %s141
      %s156 = sphi 0, %s142
      %s160 = sphi 0, %s160
      %s162 = sphi 0, %s160
      %s163 = sphi 0, %s162
      %s177 = sphi 0, %s163
      %s185 = sphi 0, %s187
      %s188 = sphi 0, %s185
      %s189 = sphi 0, %s188
      %s205 = sphi 0, %s189
    $region4: #{tpu_custom_call.1} parent=1 // loop_header_branch
      %24 = sbr.rel (%p22) target = $region8
    $region5: #{tpu_custom_call.1} parent=1 // loop_body
      %s26 = ssub.s32 %s21, 1
      %s27 = ssub.s32 %s21, 2
      %s34 = sadd.s32 1, %s29
      %p35 = scmp.ge.s32.totalorder %s34, 1
      %s36 = scalar_select %p35, 0, %s34
      %s37 = sadd.s32 1, %s28
      %s38 = scalar_select %p35, %s37, %s28
      %p39 = scmp.ge.s32.totalorder %s38, 2
      %s40 = scalar_select %p39, 0, %s38
      %s41 = ssub.s32 %s28, %s40
      %s42 = ssub.s32 %s29, %s36
      %s43 = sor.u32 %s41, %s42
      %p44 = scmp.eq.s32.totalorder %s43, 0
      %s46 = sadd.s32 %s45, 1
      %s47 = scalar_select %p44, %s45, %s46
      %p50 = pneg %p44
      %p51 = scmp.eq.s32.totalorder %s21, 1
      %p52 = por %p50, %p51
      %p53 = scmp.ne.s32.totalorder %s45, %s48
      %p54 = scmp.eq.s32.totalorder %s21, 0
      %p55 = por %p53, %p54
      %p56 = scmp.ne.s32.totalorder %s45, %s48
      %p57 = scmp.eq.s32.totalorder %s26, 1
      %p58 = por %p56, %p57
      %p59 = scmp.ne.s32.totalorder %s48, %s49
      %p60 = scmp.eq.s32.totalorder %s26, 0
      %p61 = por %p59, %p60
      %p62 = scmp.ne.s32.totalorder %s48, %s49
      %p63 = scmp.eq.s32.totalorder %s27, 1
      %p64 = por %p62, %p63
      %p66 = scmp.ne.s32.totalorder %s49, %s65
      %p67 = scmp.eq.s32.totalorder %s27, 0
      %p68 = por %p66, %p67
      %s69 = ssub.s32 %s28, %s40
      %s70 = ssub.s32 %s29, %s36
      %s71 = sor.u32 %s69, %s70
      %p72 = scmp.eq.s32.totalorder %s71, 0
      %s74 = sadd.s32 %s73, 1
      %s75 = scalar_select %p72, %s73, %s74
      %p78 = pneg %p72
      %p79 = scmp.eq.s32.totalorder %s21, 1
      %p80 = por %p78, %p79
      %p81 = scmp.ne.s32.totalorder %s73, %s76
      %p82 = scmp.eq.s32.totalorder %s21, 0
      %p83 = por %p81, %p82
      %p84 = scmp.ne.s32.totalorder %s73, %s76
      %p85 = scmp.eq.s32.totalorder %s26, 1
      %p86 = por %p84, %p85
      %p87 = scmp.ne.s32.totalorder %s76, %s77
      %p88 = scmp.eq.s32.totalorder %s26, 0
      %p89 = por %p87, %p88
      %p90 = scmp.ne.s32.totalorder %s76, %s77
      %p91 = scmp.eq.s32.totalorder %s27, 1
      %p92 = por %p90, %p91
      %p94 = scmp.ne.s32.totalorder %s77, %s93
      %p95 = scmp.eq.s32.totalorder %s27, 0
      %p96 = por %p94, %p95
      %s98 = sadd.s32 %s97, 1
      %p101 = scmp.eq.s32.totalorder %s21, 1
      %p102 = scmp.ne.s32.totalorder %s97, %s99
      %p103 = scmp.eq.s32.totalorder %s21, 0
      %p104 = por %p102, %p103
      %p105 = scmp.ne.s32.totalorder %s97, %s99
      %p106 = scmp.eq.s32.totalorder %s26, 1
      %p107 = por %p105, %p106
      %p108 = scmp.ne.s32.totalorder %s99, %s100
      %p109 = scmp.eq.s32.totalorder %s26, 0
      %p110 = por %p108, %p109
      %p111 = scmp.ne.s32.totalorder %s99, %s100
      %p112 = scmp.eq.s32.totalorder %s27, 1
      %p113 = por %p111, %p112
      %p115 = scmp.ne.s32.totalorder %s100, %s114
      %p116 = scmp.eq.s32.totalorder %s27, 0
      %p117 = por %p115, %p116
      %s119 = sadd.s32 %s118, 1
      %p122 = scmp.eq.s32.totalorder %s21, 1
      %p123 = scmp.ne.s32.totalorder %s118, %s120
      %p124 = scmp.eq.s32.totalorder %s21, 0
      %p125 = por %p123, %p124
      %p126 = scmp.ne.s32.totalorder %s118, %s120
      %p127 = scmp.eq.s32.totalorder %s26, 1
      %p128 = por %p126, %p127
      %p129 = scmp.ne.s32.totalorder %s120, %s121
      %p130 = scmp.eq.s32.totalorder %s26, 0
      %p131 = por %p129, %p130
      %p132 = scmp.ne.s32.totalorder %s120, %s121
      %p133 = scmp.eq.s32.totalorder %s27, 1
      %p134 = por %p132, %p133
      %p136 = scmp.ne.s32.totalorder %s121, %s135
      %p137 = scmp.eq.s32.totalorder %s27, 0
      %p138 = por %p136, %p137
      %s140 = sadd.s32 %s139, 1
      %p143 = scmp.eq.s32.totalorder %s21, 1
      %p144 = scmp.ne.s32.totalorder %s139, %s141
      %p145 = scmp.eq.s32.totalorder %s21, 0
      %p146 = por %p144, %p145
      %p147 = scmp.ne.s32.totalorder %s139, %s141
      %p148 = scmp.eq.s32.totalorder %s26, 1
      %p149 = por %p147, %p148
      %p150 = scmp.ne.s32.totalorder %s141, %s142
      %p151 = scmp.eq.s32.totalorder %s26, 0
      %p152 = por %p150, %p151
      %p153 = scmp.ne.s32.totalorder %s141, %s142
      %p154 = scmp.eq.s32.totalorder %s27, 1
      %p155 = por %p153, %p154
      %p157 = scmp.ne.s32.totalorder %s142, %s156
      %p158 = scmp.eq.s32.totalorder %s27, 0
      %p159 = por %p157, %p158
      %s161 = sadd.s32 %s160, 1
      %p164 = scmp.eq.s32.totalorder %s21, 1
      %p165 = scmp.ne.s32.totalorder %s160, %s162
      %p166 = scmp.eq.s32.totalorder %s21, 0
      %p167 = por %p165, %p166
      %p168 = scmp.ne.s32.totalorder %s160, %s162
      %p169 = scmp.eq.s32.totalorder %s26, 1
      %p170 = por %p168, %p169
      %p171 = scmp.ne.s32.totalorder %s162, %s163
      %p172 = scmp.eq.s32.totalorder %s26, 0
      %p173 = por %p171, %p172
      %p174 = scmp.ne.s32.totalorder %s162, %s163
      %p175 = scmp.eq.s32.totalorder %s27, 1
      %p176 = por %p174, %p175
      %p178 = scmp.ne.s32.totalorder %s163, %s177
      %p179 = scmp.eq.s32.totalorder %s27, 0
      %p180 = por %p178, %p179
      %s181 = ssub.s32 %s28, %s40
      %s182 = ssub.s32 %s29, %s36
      %s183 = sor.u32 %s181, %s182
      %p184 = scmp.eq.s32.totalorder %s183, 0
      %s186 = sadd.s32 %s185, 1
      %s187 = scalar_select %p184, %s185, %s186
      %p190 = pneg %p184
      %p191 = scmp.eq.s32.totalorder %s21, 1
      %p192 = por %p190, %p191
      %p193 = scmp.ne.s32.totalorder %s185, %s188
      %p194 = scmp.eq.s32.totalorder %s21, 0
      %p195 = por %p193, %p194
      %p196 = scmp.ne.s32.totalorder %s185, %s188
      %p197 = scmp.eq.s32.totalorder %s26, 1
      %p198 = por %p196, %p197
      %p199 = scmp.ne.s32.totalorder %s188, %s189
      %p200 = scmp.eq.s32.totalorder %s26, 0
      %p201 = por %p199, %p200
      %p202 = scmp.ne.s32.totalorder %s188, %s189
      %p203 = scmp.eq.s32.totalorder %s27, 1
      %p204 = por %p202, %p203
      %p206 = scmp.ne.s32.totalorder %s189, %s205
      %p207 = scmp.eq.s32.totalorder %s27, 0
      %p208 = por %p206, %p207
      %p209 = scmp.le.s32.totalorder 1, %s21
      %p210 = scmp.lt.s32.totalorder %s21, 3
      %p211 = pnand %p209, %p210
      %p212 = pneg %p211
      // Predicated region
      $region9: #{tpu_custom_call.1} parent=5 // pred_check
        _
      $region10: #{tpu_custom_call.1} parent=5 // pred_check_branch
        %214 = sbr.rel (%p211) target = $region12
      $region11: #{tpu_custom_call.1} parent=5 // pred_region
        %s215 = ssub.s32 %s21, 1
        // Predicated region
        $region13: #{tpu_custom_call.1} parent=11 // pred_check
          %p216 = pneg %p110
        $region14: #{tpu_custom_call.1} parent=11 // pred_check_branch
          %218 = sbr.rel (%p216) target = $region16
        $region15: #{tpu_custom_call.1} parent=11 // pred_region
          _
        $region16: #{tpu_custom_call.1} parent=11 // pred_fallthru
          _
        // Predicated region
        $region17: #{tpu_custom_call.1} parent=11 // pred_check
          %p219 = pneg %p131
        $region18: #{tpu_custom_call.1} parent=11 // pred_check_branch
          %221 = sbr.rel (%p219) target = $region20
        $region19: #{tpu_custom_call.1} parent=11 // pred_region
          _
        $region20: #{tpu_custom_call.1} parent=11 // pred_fallthru
          _
        // Predicated region
        $region21: #{tpu_custom_call.1} parent=11 // pred_check
          %p222 = pneg %p152
        $region22: #{tpu_custom_call.1} parent=11 // pred_check_branch
          %224 = sbr.rel (%p222) target = $region24
        $region23: #{tpu_custom_call.1} parent=11 // pred_region
          _
        $region24: #{tpu_custom_call.1} parent=11 // pred_fallthru
          _
        // Predicated region
        $region25: #{tpu_custom_call.1} parent=11 // pred_check
          %p225 = pneg %p173
        $region26: #{tpu_custom_call.1} parent=11 // pred_check_branch
          %227 = sbr.rel (%p225) target = $region28
        $region27: #{tpu_custom_call.1} parent=11 // pred_region
          _
        $region28: #{tpu_custom_call.1} parent=11 // pred_fallthru
          _
      $region12: #{tpu_custom_call.1} parent=5 // pred_fallthru
        _
      %p228 = scmp.lt.s32.totalorder %s21, 2
      // Predicated region
      $region29: #{tpu_custom_call.1} parent=5 // pred_check
        %p229 = pneg %p228
      $region30: #{tpu_custom_call.1} parent=5 // pred_check_branch
        %231 = sbr.rel (%p229) target = $region32
      $region31: #{tpu_custom_call.1} parent=5 // pred_region
        // Predicated region
        $region33: #{tpu_custom_call.1} parent=31 // pred_check
          %p232 = pneg %p55
        $region34: #{tpu_custom_call.1} parent=31 // pred_check_branch
          %234 = sbr.rel (%p232) target = $region36
        $region35: #{tpu_custom_call.1} parent=31 // pred_region
          %s235 = sand.u32 %s45, 1
          %s236 = scalar_lea.sflag [#allocation3], %s235
          %s237 = sand.u32 %s45, 1
          %s238 = smul.addr %s237, 8
          %s239 = scalar_lea.vmem [#allocation2], %s238
          %s240 = smul.u32 2, %s29
          %242 = vsyncadd %s236, 0
          %s243 = smul.addr %s28, 2
          %s244 = sadd.s32 %s240, %s243
          %s245 = smul.addr %s244, 4
          %s246 = scalar_lea.hbm %s0, %s245
          %s248 = sshll.u32 %s246, 4
          %s249 = int_to_ptr.hbm [resolvable:$true] %s248
          %s250 = sshll.u32 %s239, 4
          %s251 = int_to_ptr.vmem [resolvable:$true] %s250
          %253 = dma.hbm_to_vmem [thread:$0]  %s249, 128, %s251, %s236
        $region36: #{tpu_custom_call.1} parent=31 // pred_fallthru
          _
        // Predicated region
        $region37: #{tpu_custom_call.1} parent=31 // pred_check
          %p254 = pneg %p83
        $region38: #{tpu_custom_call.1} parent=31 // pred_check_branch
          %256 = sbr.rel (%p254) target = $region40
        $region39: #{tpu_custom_call.1} parent=31 // pred_region
          %s257 = sand.u32 %s73, 1
          %s258 = scalar_lea.sflag [#allocation6], %s257
          %s259 = sand.u32 %s73, 1
          %s260 = smul.addr %s259, 8
          %s261 = scalar_lea.vmem [#allocation5], %s260
          %s262 = smul.u32 2, %s29
          %264 = vsyncadd %s258, 0
          %s265 = smul.addr %s28, 2
          %s266 = sadd.s32 %s262, %s265
          %s267 = smul.addr %s266, 4
          %s268 = scalar_lea.hbm %s1, %s267
          %s270 = sshll.u32 %s268, 4
          %s271 = int_to_ptr.hbm [resolvable:$true] %s270
          %s272 = sshll.u32 %s261, 4
          %s273 = int_to_ptr.vmem [resolvable:$true] %s272
          %275 = dma.hbm_to_vmem [thread:$0]  %s271, 128, %s273, %s258
        $region40: #{tpu_custom_call.1} parent=31 // pred_fallthru
          _
      $region32: #{tpu_custom_call.1} parent=5 // pred_fallthru
        _
      %p276 = scmp.le.s32.totalorder 1, %s21
      %p277 = scmp.lt.s32.totalorder %s21, 3
      %p278 = pnand %p276, %p277
      %p279 = pneg %p278
      // Predicated region
      $region41: #{tpu_custom_call.1} parent=5 // pred_check
        _
      $region42: #{tpu_custom_call.1} parent=5 // pred_check_branch
        %281 = sbr.rel (%p278) target = $region44
      $region43: #{tpu_custom_call.1} parent=5 // pred_region
        %s282 = ssub.s32 %s21, 1
        %s283 = sand.u32 %s48, 1
        %s284 = scalar_lea.sflag [#allocation3], %s283
        %s285 = sand.u32 %s48, 1
        %s286 = smul.addr %s285, 8
        %s287 = scalar_lea.vmem [#allocation2], %s286
        // Predicated region
        $region45: #{tpu_custom_call.1} parent=43 // pred_check
          %p288 = pneg %p61
        $region46: #{tpu_custom_call.1} parent=43 // pred_check_branch
          %290 = sbr.rel (%p288) target = $region48
        $region47: #{tpu_custom_call.1} parent=43 // pred_region
          %292 = dma.done %s284, 128
        $region48: #{tpu_custom_call.1} parent=43 // pred_fallthru
          _
        %s293 = sand.u32 %s76, 1
        %s294 = scalar_lea.sflag [#allocation6], %s293
        %s295 = sand.u32 %s76, 1
        %s296 = smul.addr %s295, 8
        %s297 = scalar_lea.vmem [#allocation5], %s296
        // Predicated region
        $region49: #{tpu_custom_call.1} parent=43 // pred_check
          %p298 = pneg %p89
        $region50: #{tpu_custom_call.1} parent=43 // pred_check_branch
          %300 = sbr.rel (%p298) target = $region52
        $region51: #{tpu_custom_call.1} parent=43 // pred_region
          %302 = dma.done %s294, 128
        $region52: #{tpu_custom_call.1} parent=43 // pred_fallthru
          _
        %s303 = sand.u32 %s48, 1
        %s304 = scalar_lea.sflag [#allocation3], %s303
        %s305 = sand.u32 %s48, 1
        %s306 = smul.addr %s305, 8
        %s307 = scalar_lea.vmem [#allocation2], %s306
        %p308 = pneg %p61
        %p309 = pneg %p58
        %s310 = sand.u32 %s76, 1
        %s311 = scalar_lea.sflag [#allocation6], %s310
        %s312 = sand.u32 %s76, 1
        %s313 = smul.addr %s312, 8
        %s314 = scalar_lea.vmem [#allocation5], %s313
        %p315 = pneg %p89
        %p316 = pneg %p86
        %p317 = pneg %p110
        %p318 = pneg %p107
        %p319 = pneg %p131
        %p320 = pneg %p128
        %p321 = pneg %p152
        %p322 = pneg %p149
        %p323 = pneg %p173
        %p324 = pneg %p170
        %p325 = pneg %p201
        %p326 = pneg %p198
        %s327 = sand.u32 %s188, 1
        %s328 = scalar_lea.sflag [#allocation4], %s327
        %s329 = sand.u32 %s188, 1
        %s330 = smul.addr %s329, 8
        %s331 = scalar_lea.vmem [#allocation7], %s330
        %s332 = smul.u32 2, %s31
        %s333 = smul.u32 2, %s31
        %s334 = smul.u32 2, %s31
        %v335 = vld [vmem:[%s287] sm:$0xff]
        %v336 = vld [vmem:[%s2] sm:$0xf]
        %v337 = vld [vmem:[%s3] sm:$0xf]
        %339 = vset.pattern.permute.xlu0 0
        %340 = vperm.xlu0 %339, %v337
        %v341 = vpop.permute.xlu0 %340
        %344 = vst [vmem:[#allocation1] ss:$2 sm:$0xff] %v335
        %v345 = vld.sshfl [vmem:[#allocation1] sm:$0xff pattern:$0x75316420]
        %v346 = vld.sshfl [vmem:[#allocation1 + $0x8] sm:$0xff pattern:$0x75316420]
        %vm347 = vcmask 31744
        %v349 = vsel %vm347, %v336, 0
        %vm351 = vcmask 1043456
        %v352 = vsel %vm351, %v345, 0
        %v354 = vsel %vm351, %v346, 0
        %356 = vmatpush.msra.mxu0 0.0
        %357 = vmatpush.msra.mxu0 0.0
        %358 = vmatpush.msra.mxu0 0.0
        %359 = vmatpush.msra.mxu0 0.0
        %360 = vmatpush.msra.mxu0 0.0
        %361 = vmatpush.msra.mxu0 0.0
        %362 = vmatpush.msra.mxu0 0.0
        %363 = vmatpush.msra.mxu0 0.0
        %364 = vmatpush.msra.mxu0 0.0
        %365 = vmatpush.msra.mxu0 0.0
        %366 = vmatpush.msra.mxu0 0.0
        %367 = vmatpush.msra.mxu0 0.0
        %368 = vmatpush.msra.mxu0 0.0
        %369 = vmatpush.msra.mxu0 0.0
        %370 = vmatpush.msra.mxu0 0.0
        %371 = vmatpush.msra.mxu0 %v352
        %372 = vmatmul.f32.gmra.mxu0 %v349
        %v373 = vpop.f32.mrf.mxu0
        %v374 = vadd.f32 %v341, %v373
        %375 = vdwg.mxu0
        %376 = vmatpush.msra.mxu0 0.0
        %377 = vmatpush.msra.mxu0 0.0
        %378 = vmatpush.msra.mxu0 0.0
        %379 = vmatpush.msra.mxu0 0.0
        %380 = vmatpush.msra.mxu0 0.0
        %381 = vmatpush.msra.mxu0 0.0
        %382 = vmatpush.msra.mxu0 0.0
        %383 = vmatpush.msra.mxu0 0.0
        %384 = vmatpush.msra.mxu0 0.0
        %385 = vmatpush.msra.mxu0 0.0
        %386 = vmatpush.msra.mxu0 0.0
        %387 = vmatpush.msra.mxu0 0.0
        %388 = vmatpush.msra.mxu0 0.0
        %389 = vmatpush.msra.mxu0 0.0
        %390 = vmatpush.msra.mxu0 0.0
        %391 = vmatpush.msra.mxu0 %v354
        %392 = vmatmul.f32.gmra.mxu0 %v349
        %v393 = vpop.f32.mrf.mxu0
        %v394 = vadd.f32 %v341, %v393
        %395 = vdwg.mxu0
        %v396 = vmax.f32 %v374, 0.0
        %v397 = vmax.f32 %v394, 0.0
        %v398 = vld [vmem:[%s4] sm:$0xf]
        %v399 = vld [vmem:[%s5] sm:$0xf]
        %401 = vset.pattern.permute.xlu0 0
        %402 = vperm.xlu0 %401, %v399
        %v403 = vpop.permute.xlu0 %402
        %v406 = vsel %vm347, %v398, 0
        %v409 = vsel %vm351, %v396, 0
        %v412 = vsel %vm351, %v397, 0
        %414 = vmatpush.msra.mxu0 0.0
        %415 = vmatpush.msra.mxu0 0.0
        %416 = vmatpush.msra.mxu0 0.0
        %417 = vmatpush.msra.mxu0 0.0
        %418 = vmatpush.msra.mxu0 0.0
        %419 = vmatpush.msra.mxu0 0.0
        %420 = vmatpush.msra.mxu0 0.0
        %421 = vmatpush.msra.mxu0 0.0
        %422 = vmatpush.msra.mxu0 0.0
        %423 = vmatpush.msra.mxu0 0.0
        %424 = vmatpush.msra.mxu0 0.0
        %425 = vmatpush.msra.mxu0 0.0
        %426 = vmatpush.msra.mxu0 0.0
        %427 = vmatpush.msra.mxu0 0.0
        %428 = vmatpush.msra.mxu0 0.0
        %429 = vmatpush.msra.mxu0 %v409
        %430 = vmatmul.f32.gmra.mxu0 %v406
        %v431 = vpop.f32.mrf.mxu0
        %v432 = vadd.f32 %v403, %v431
        %433 = vdwg.mxu0
        %434 = vmatpush.msra.mxu0 0.0
        %435 = vmatpush.msra.mxu0 0.0
        %436 = vmatpush.msra.mxu0 0.0
        %437 = vmatpush.msra.mxu0 0.0
        %438 = vmatpush.msra.mxu0 0.0
        %439 = vmatpush.msra.mxu0 0.0
        %440 = vmatpush.msra.mxu0 0.0
        %441 = vmatpush.msra.mxu0 0.0
        %442 = vmatpush.msra.mxu0 0.0
        %443 = vmatpush.msra.mxu0 0.0
        %444 = vmatpush.msra.mxu0 0.0
        %445 = vmatpush.msra.mxu0 0.0
        %446 = vmatpush.msra.mxu0 0.0
        %447 = vmatpush.msra.mxu0 0.0
        %448 = vmatpush.msra.mxu0 0.0
        %449 = vmatpush.msra.mxu0 %v412
        %450 = vmatmul.f32.gmra.mxu0 %v406
        %v451 = vpop.f32.mrf.mxu0
        %v452 = vadd.f32 %v403, %v451
        %453 = vdwg.mxu0
        %v454 = vld [vmem:[%s297] sm:$0xff]
        %v455 = vxor.u32 %v432, 2147483648
        %v456 = vxor.u32 %v452, 2147483648
        %v457 = vmul.f32 %v455, 1.442695
        %v458 = vpow.pop %v457
        %v459 = vmul.f32 %v456, 1.442695
        %v460 = vpow.pop %v459
        %v461 = vadd.f32 %v458, 1.0
        %v462 = vadd.f32 %v460, 1.0
        %v463 = vrcp.pop %v461
        %v464 = vmul.f32 %v461, %v463
        %v465 = vsub.f32 1.0, %v464
        %v466 = vmul.f32 %v463, %v465
        %v467 = vadd.f32 %v463, %v466
        %vm468 = vweird.f32 %v461
        %vm469 = vweird.f32 %v463
        %vm470 = vmor %vm468, %vm469
        %v471 = vsel %vm470, %v463, %v467
        %v472 = vand.u32 2147483647, %v461
        %vm473 = vcmp.eq.f32.partialorder %v472, 8.507059e+37
        %v474 = vand.u32 %v461, 2147483648
        %v475 = vor.u32 1.1754944e-38, %v474
        %v476 = vsel %vm473, %v475, %v471
        %v477 = vmul.f32 1.0, %v476
        %v478 = vrcp.pop %v462
        %v479 = vmul.f32 %v462, %v478
        %v480 = vsub.f32 1.0, %v479
        %v481 = vmul.f32 %v478, %v480
        %v482 = vadd.f32 %v478, %v481
        %vm483 = vweird.f32 %v462
        %vm484 = vweird.f32 %v478
        %vm485 = vmor %vm483, %vm484
        %v486 = vsel %vm485, %v478, %v482
        %v487 = vand.u32 2147483647, %v462
        %vm488 = vcmp.eq.f32.partialorder %v487, 8.507059e+37
        %v489 = vand.u32 %v462, 2147483648
        %v490 = vor.u32 1.1754944e-38, %v489
        %v491 = vsel %vm488, %v490, %v486
        %v492 = vmul.f32 1.0, %v491
        %v495 = vrot.slane %v492, 4
        %v496 = vsel %vm351, %v477, %v495
        %v498 = vmul.f32 %v454, %v496
        %499 = vst [vmem:[%s331] sm:$0xff] %v498
        %s500 = sand.u32 %s188, 1
        %s501 = scalar_lea.sflag [#allocation4], %s500
        %s502 = sand.u32 %s188, 1
        %s503 = smul.addr %s502, 8
        %s504 = scalar_lea.vmem [#allocation7], %s503
        // Predicated region
        $region53: #{tpu_custom_call.1} parent=43 // pred_check
          %p505 = pneg %p198
        $region54: #{tpu_custom_call.1} parent=43 // pred_check_branch
          %507 = sbr.rel (%p505) target = $region56
        $region55: #{tpu_custom_call.1} parent=43 // pred_region
          %s508 = smul.u32 2, %s31
          %510 = vsyncadd %s501, 0
          %s511 = smul.addr %s30, 2
          %s512 = sadd.s32 %s508, %s511
          %s513 = smul.addr %s512, 4
          %s514 = scalar_lea.hbm %s6, %s513
          %s516 = sshll.u32 %s504, 4
          %s517 = int_to_ptr.vmem [resolvable:$true] %s516
          %s518 = sshll.u32 %s514, 4
          %s519 = int_to_ptr.hbm [resolvable:$true] %s518
          %521 = dma.vmem_to_hbm [thread:$0]  %s517, 128, %s519, %s501
        $region56: #{tpu_custom_call.1} parent=43 // pred_fallthru
          _
      $region44: #{tpu_custom_call.1} parent=5 // pred_fallthru
        _
      %p522 = scmp.le.s32.totalorder 2, %s21
      // Predicated region
      $region57: #{tpu_custom_call.1} parent=5 // pred_check
        %p523 = pneg %p522
      $region58: #{tpu_custom_call.1} parent=5 // pred_check_branch
        %525 = sbr.rel (%p523) target = $region60
      $region59: #{tpu_custom_call.1} parent=5 // pred_region
        %s526 = ssub.s32 %s21, 2
        // Predicated region
        $region61: #{tpu_custom_call.1} parent=59 // pred_check
          %p527 = pneg %p204
        $region62: #{tpu_custom_call.1} parent=59 // pred_check_branch
          %529 = sbr.rel (%p527) target = $region64
        $region63: #{tpu_custom_call.1} parent=59 // pred_region
          %s530 = sand.u32 %s189, 1
          %s531 = scalar_lea.sflag [#allocation4], %s530
          %s532 = sand.u32 %s189, 1
          %s533 = smul.addr %s532, 8
          %s534 = scalar_lea.vmem [#allocation7], %s533
          %536 = dma.done %s531, 128
        $region64: #{tpu_custom_call.1} parent=59 // pred_fallthru
          _
      $region60: #{tpu_custom_call.1} parent=5 // pred_fallthru
        _
    $region6: #{tpu_custom_call.1} parent=1 // loop_footer
      %s25 = sadd.s32 1, %s21
    $region7: #{tpu_custom_call.1} parent=1 // loop_footer_branch
      %20 = sbr.rel target = $region3
    $region8: #{tpu_custom_call.1} parent=1 // loop_exit
      _
    %537 = vsyncpa [#allocation3], 1
    %s538 = scalar_lea.sflag [#allocation3], 1
    %539 = vsyncpa %s538, 1
    %540 = vsyncpa [#allocation6], 1
    %s541 = scalar_lea.sflag [#allocation6], 1
    %542 = vsyncpa %s541, 1
    %543 = vsyncpa [#allocation4], 1
    %s544 = scalar_lea.sflag [#allocation4], 1
    %545 = vsyncpa %s544, 1

</llo_original>
